<compile_context>
chip_gen: v7x
topology: tpu7x:2x2x1
jax: 0.10.0
libtpu: 0.0.40
codegen_flags: <defaults>
</compile_context>

<pallas_src>
import functools

import jax
import jax.numpy as jnp
from jax import lax
from jax.experimental import pallas as pl
from jax.experimental.pallas import tpu as pltpu


def _minibatch_std_kernel(x_ref, o_ref, acc_ref, *, k, sub, l_in, tl):
    """One (group-block, lane-tile) step.

    x_ref : (1, k*sub, tl)   flattened input rows of k groups.
    o_ref : (1, k*sub, tl)   flattened output rows ((C+1)*H*W wide).
    acc_ref: (1, k, 1) f32   running per-group sum of std over data lanes.
    """
    j = pl.program_id(1)
    ksub = k * sub

    @pl.when(j == 0)
    def _init():
        acc_ref[...] = jnp.zeros_like(acc_ref)

    # Global lane positions of this tile: [0, l_in) passthrough data,
    # [l_in, l_out) appended stat channel, beyond that is padding that Pallas
    # clips on writeback.
    pos = j * tl + lax.broadcasted_iota(jnp.int32, (1, 1, tl), 2)
    is_data = pos < l_in                                     # (1, 1, tl)

    # Single read / single widen of the tile; reused by the reduction and by
    # the final fused store (previously re-read 2*sub+1 times).
    xv = x_ref[...].astype(jnp.float32)                      # (1, k*sub, tl)

    # Only tiles that contain data lanes pay for the variance pass;
    # stat-only tiles just broadcast the already-accumulated statistic.
    @pl.when(j * tl < l_in)
    def _accumulate():
        inv_nm1 = 1.0 / (sub - 1)
        gidx = lax.broadcasted_iota(jnp.int32, (1, k, 1), 1)
        upd = jnp.zeros((1, k, 1), jnp.float32)
        for g in range(k):                                   # k is tiny & static
            xg = xv[:, g * sub:(g + 1) * sub, :]             # (1, sub, tl)
            mean = jnp.mean(xg, axis=1, keepdims=True)       # sublane reduce
            ssq = jnp.sum(jnp.square(xg - mean), axis=1, keepdims=True)
            std = jnp.sqrt(ssq * inv_nm1 + 1e-8)             # (1, 1, tl)
            s_g = jnp.sum(jnp.where(is_data, std, 0.0), axis=2,
                          keepdims=True)                     # (1, 1, 1)
            upd = jnp.where(gidx == g, s_g, upd)
        acc_ref[...] += upd                                  # (1, k, 1)

    # Per-group statistic = mean of std over the C*H*W data lanes.  By the time
    # any stat lane of this tile is written, every data lane of its group has
    # already been accumulated (stat lanes follow all data lanes in j).
    stat_all = acc_ref[...] * (1.0 / l_in)                   # (1, k, 1)

    # Broadcast each group's scalar to its `sub` rows of the block.
    row = lax.broadcasted_iota(jnp.int32, (1, ksub, 1), 1)
    stat_rows = jnp.zeros((1, ksub, 1), jnp.float32)
    for g in range(k):
        in_g = (row >= g * sub) & (row < (g + 1) * sub)
        stat_rows = jnp.where(in_g, stat_all[:, g:g + 1, :], stat_rows)

    # One wide lane-dense store: passthrough where is_data, stat elsewhere.
    o_ref[...] = jnp.where(is_data, xv, stat_rows).astype(o_ref.dtype)


def minibatch_std_layer(x, group_size=4, *, lane_tile_budget_bytes=4 * 1024 * 1024):
    """x: (N, C, H, W) -> (N, C+1, H, W), matching MinibatchStdLayer.forward."""
    N, C, H, W = x.shape
    sub = min(N, group_size)
    if N % sub != 0:
        sub = N
    G = N // sub

    if sub <= 1:
        # PyTorch branch for subGroupSize == 1: append an all-zero channel.
        zeros = jnp.zeros((N, 1, H, W), dtype=x.dtype)
        return jnp.concatenate([x, zeros], axis=1)

    hw = H * W
    l_in = C * hw                        # flattened per-sample input width
    l_out = (C + 1) * hw                 # flattened per-sample output width
    itemsize = jnp.dtype(x.dtype).itemsize

    # Sublane packing of this dtype: 8 rows/vreg for 32-bit, 16 for 16-bit,
    # 32 for 8-bit.  Drives group packing and the dtype-aware VMEM budget.
    pack = max(8, 8 * (4 // itemsize))

    # Pack k whole groups per block so the sublane axis is (close to) fully
    # occupied when sub < pack (e.g. sub=4 f32 would otherwise fill 4/8
    # sublanes -> 2x padded DMA/VMEM and half-density vector work).
    k = 1
    for d in range(1, G + 1):
        if G % d == 0 and d * sub <= 256:
            k = d
            if d * sub >= pack:
                break
    gb = G // k
    ksub = k * sub
    padded_rows = -(-ksub // pack) * pack

    # Lane tile: multiple of 128 (always lane-dense).  Prefer a single fused
    # data+stat tile per group block (round_up(l_out, 128)); otherwise fall
    # back to the budgeted tile (4 MiB/buffer -> ~16 MiB double-buffered
    # in+out, inside the scoped-VMEM defaults of v5e/v6e/v7x).
    budget_tl = max(128, lane_tile_budget_bytes
                    // (padded_rows * itemsize) // 128 * 128)
    tl_full = -(-l_out // 128) * 128
    tl = tl_full if tl_full <= budget_tl else budget_tl

    nj_in = pl.cdiv(l_in, tl)            # tiles that contain data lanes
    nj = pl.cdiv(l_out, tl)              # data tiles + stat tail

    xr = x.reshape(gb, ksub, l_in)       # row-major contiguous -> free reshape

    kernel = functools.partial(_minibatch_std_kernel,
                               k=k, sub=sub, l_in=l_in, tl=tl)

    out = pl.pallas_call(
        kernel,
        out_shape=jax.ShapeDtypeStruct((gb, ksub, l_out), x.dtype),
        grid_spec=pltpu.PrefetchScalarGridSpec(
            num_scalar_prefetch=0,
            grid=(gb, nj),
            in_specs=[
                pl.BlockSpec(
                    (1, ksub, tl),
                    # Clamp: stat-only tiles reuse the last data tile (block
                    # index unchanged -> no extra DMA is issued).
                    lambda g, j: (g, 0, jnp.minimum(j, nj_in - 1)),
                )
            ],
            out_specs=pl.BlockSpec((1, ksub, tl), lambda g, j: (g, 0, j)),
            scratch_shapes=[pltpu.VMEM((1, k, 1), jnp.float32)],
        ),
        compiler_params=pltpu.CompilerParams(
            # Lane-tile axis carries the running stat accumulator -> must be
            # "arbitrary"; group blocks are independent -> "parallel".
            # TODO(synk): when gb == 1 (N == group_size) one v7x TensorCore is
            # idle; sharding the lane axis would need a cross-core (CMEM)
            # reduction and is intentionally not implemented here.
            dimension_semantics=("parallel", "arbitrary"),
            vmem_limit_bytes=32 * 1024 * 1024,
        ),
        cost_estimate=pl.CostEstimate(
            flops=6 * N * C * hw,
            transcendentals=G * C * hw,
            bytes_accessed=N * (2 * C + 1) * hw * itemsize,
        ),
    )(xr)

    return out.reshape(N, C + 1, H, W)   # free reshape


def _reference(x, group_size=4):
    """Pure-JAX reference mirroring the PyTorch forward."""
    N, C, H, W = x.shape
    sub = min(N, group_size)
    if N % sub != 0:
        sub = N
    G = N // sub
    if sub <= 1:
        y = jnp.zeros((N, 1, H, W), dtype=x.dtype)
        return jnp.concatenate([x, y], axis=1)
    y = x.reshape(G, sub, C, H, W)
    var = jnp.var(y, axis=1, ddof=1)
    std = jnp.sqrt(var + 1e-8)
    stat = jnp.mean(std.reshape(G, -1), axis=1)                 # (G,)
    y = jnp.broadcast_to(
        stat[:, None, None, None, None], (G, sub, 1, H, W)
    ).reshape(N, 1, H, W)
    return jnp.concatenate([x, y.astype(x.dtype)], axis=1)


if __name__ == "__main__":
    key = jax.random.PRNGKey(0)
    k1, k2, k3, k4 = jax.random.split(key, 4)

    # 1) Classic case: N=4, group_size=4 -> sub=4, G=1, single fused
    #    data+stat tile per group (block wider than l_in).
    x1 = jax.random.normal(k1, (4, 4, 16, 16), dtype=jnp.float32)
    out1 = jax.block_until_ready(minibatch_std_layer(x1, group_size=4))
    ref1 = _reference(x1, group_size=4)
    assert out1.shape == (4, 5, 16, 16), out1.shape
    assert jnp.allclose(out1, ref1, atol=1e-5, rtol=1e-5), "mismatch (case 1)"

    # 2) G=2 -> two groups packed into one block (k=2, full 8 f32 sublanes).
    x2 = jax.random.normal(k2, (8, 3, 8, 8), dtype=jnp.float32)
    out2 = jax.block_until_ready(minibatch_std_layer(x2, group_size=4))
    ref2 = _reference(x2, group_size=4)
    assert out2.shape == (8, 4, 8, 8), out2.shape
    assert jnp.allclose(out2, ref2, atol=1e-5, rtol=1e-5), "mismatch (case 2)"

    # 3) Tiny lane-tile budget forces multiple lane tiles per group: full data
    #    tiles, a data/stat straddle tile and a stat-only tile (accumulator
    #    carried across tiles, pl.when gate, clamped input index_map).
    x3 = jax.random.normal(k3, (4, 5, 12, 12), dtype=jnp.float32)
    out3 = jax.block_until_ready(
        minibatch_std_layer(x3, group_size=4, lane_tile_budget_bytes=8 * 1024))
    ref3 = _reference(x3, group_size=4)
    assert out3.shape == (4, 6, 12, 12), out3.shape
    assert jnp.allclose(out3, ref3, atol=1e-5, rtol=1e-5), "mismatch (case 3)"

    # 4) bf16 input: single widen on load, single narrow on the fused store.
    x4 = jax.random.normal(k4, (8, 4, 8, 8), dtype=jnp.float32).astype(jnp.bfloat16)
    out4 = jax.block_until_ready(minibatch_std_layer(x4, group_size=4))
    ref4 = _reference(x4.astype(jnp.float32), group_size=4).astype(jnp.bfloat16)
    assert out4.shape == (8, 5, 8, 8), out4.shape
    assert jnp.allclose(out4.astype(jnp.float32), ref4.astype(jnp.float32),
                        atol=2e-2, rtol=2e-2), "mismatch (case 4)"

    print("KERNEL_OK")
</pallas_src>

<mosaic_0001>
module attributes {stable_mosaic.version = 11 : i64} {
  func.func @_minibatch_std_kernel(%arg0: i32, %arg1: i32, %arg2: memref<1x4x1280xf32, #tpu.memory_space<vmem>>, %arg3: memref<1x4x1280xf32, #tpu.memory_space<vmem>>, %arg4: memref<1x1x1xf32, #tpu.memory_space<vmem>>) attributes {dimension_semantics = [#tpu.dimension_semantics<parallel>, #tpu.dimension_semantics<arbitrary>], iteration_bounds = array<i64: 1, 1>, scalar_prefetch = 0 : i64, scratch_operands = 1 : i64, tpu.core_type = #tpu.core_type<tc>, window_params = [{transform_indices = @transform_0, window_bounds = array<i64: 1, 4, 1280>}, {transform_indices = @transform_1, window_bounds = array<i64: 1, 4, 1280>}]} {
    %c0_i32 = arith.constant 0 : i32
    %0 = arith.cmpi eq, %arg1, %c0_i32 : i32
    %1 = arith.extui %0 : i1 to i32
    %c0_i32_0 = arith.constant 0 : i32
    %2 = arith.cmpi ne, %1, %c0_i32_0 : i32
    scf.if %2 {
      %cst_14 = arith.constant 0.000000e+00 : f32
      %33 = vector.broadcast %cst_14 : f32 to vector<1x1x1xf32>
      %c0_15 = arith.constant 0 : index
      %c0_16 = arith.constant 0 : index
      %c0_17 = arith.constant 0 : index
      %34 = vector.load %arg4[%c0_15, %c0_16, %c0_17] : memref<1x1x1xf32, #tpu.memory_space<vmem>>, vector<1x1x1xf32>
      tpu.vector_store %arg4[%c0_15, %c0_16, %c0_17], %33 {strides = array<i32>} : memref<1x1x1xf32, #tpu.memory_space<vmem>>, vector<1x1x1xf32>,
    } else {
    }
    %c1280_i32 = arith.constant 1280 : i32
    %3 = arith.muli %arg1, %c1280_i32 : i32
    %4 = tpu.iota {dimensions = array<i32: 2>} : vector<1x1x1280xi32>
    %5 = vector.broadcast %3 : i32 to vector<1x1x1280xi32>
    %6 = arith.addi %5, %4 : vector<1x1x1280xi32>
    %c1024_i32 = arith.constant 1024 : i32
    %7 = vector.broadcast %c1024_i32 : i32 to vector<1x1x1280xi32>
    %8 = arith.cmpi slt, %6, %7 : vector<1x1x1280xi32>
    %c0 = arith.constant 0 : index
    %c0_1 = arith.constant 0 : index
    %c0_2 = arith.constant 0 : index
    %9 = vector.load %arg2[%c0, %c0_1, %c0_2] : memref<1x4x1280xf32, #tpu.memory_space<vmem>>, vector<1x4x1280xf32>
    %c1280_i32_3 = arith.constant 1280 : i32
    %10 = arith.muli %arg1, %c1280_i32_3 : i32
    %c1024_i32_4 = arith.constant 1024 : i32
    %11 = arith.cmpi slt, %10, %c1024_i32_4 : i32
    %12 = arith.extui %11 : i1 to i32
    %c0_i32_5 = arith.constant 0 : i32
    %13 = arith.cmpi ne, %12, %c0_i32_5 : i32
    scf.if %13 {
      %33 = tpu.iota {dimensions = array<i32: 1>} : vector<1x1x1xi32>
      %cst_14 = arith.constant 0.000000e+00 : f32
      %34 = vector.broadcast %cst_14 : f32 to vector<1x1x1xf32>
      %cst_15 = arith.constant dense<0.000000e+00> : vector<1x1280xf32>
      %35 = vector.multi_reduction <add>, %9, %cst_15 [1] : vector<1x4x1280xf32> to vector<1x1280xf32>
      %36 = vector.shape_cast %35 : vector<1x1280xf32> to vector<1x1x1280xf32>
      %cst_16 = arith.constant 4.000000e+00 : f32
      %37 = vector.broadcast %cst_16 : f32 to vector<1x1x1280xf32>
      %38 = arith.divf %36, %37 : vector<1x1x1280xf32>
      %39 = vector.broadcast %38 : vector<1x1x1280xf32> to vector<1x4x1280xf32>
      %40 = arith.subf %9, %39 : vector<1x4x1280xf32>
      %41 = arith.mulf %40, %40 : vector<1x4x1280xf32>
      %cst_17 = arith.constant dense<0.000000e+00> : vector<1x1280xf32>
      %42 = vector.multi_reduction <add>, %41, %cst_17 [1] : vector<1x4x1280xf32> to vector<1x1280xf32>
      %43 = vector.shape_cast %42 : vector<1x1280xf32> to vector<1x1x1280xf32>
      %cst_18 = arith.constant 0.333333343 : f32
      %44 = vector.broadcast %cst_18 : f32 to vector<1x1x1280xf32>
      %45 = arith.mulf %43, %44 : vector<1x1x1280xf32>
      %cst_19 = arith.constant 9.99999993E-9 : f32
      %46 = vector.broadcast %cst_19 : f32 to vector<1x1x1280xf32>
      %47 = arith.addf %45, %46 : vector<1x1x1280xf32>
      %48 = math.sqrt %47 : vector<1x1x1280xf32>
      %cst_20 = arith.constant 0.000000e+00 : f32
      %49 = vector.broadcast %cst_20 : f32 to vector<1x1x1280xf32>
      %50 = arith.select %8, %48, %49 : vector<1x1x1280xi1>, vector<1x1x1280xf32>
      %cst_21 = arith.constant dense<0.000000e+00> : vector<1x1xf32>
      %51 = vector.multi_reduction <add>, %50, %cst_21 [2] : vector<1x1x1280xf32> to vector<1x1xf32>
      %52 = vector.shape_cast %51 : vector<1x1xf32> to vector<1x1x1xf32>
      %c0_i32_22 = arith.constant 0 : i32
      %53 = vector.broadcast %c0_i32_22 : i32 to vector<1x1x1xi32>
      %54 = arith.cmpi eq, %33, %53 : vector<1x1x1xi32>
      %55 = arith.select %54, %52, %34 : vector<1x1x1xi1>, vector<1x1x1xf32>
      %c0_23 = arith.constant 0 : index
      %c0_24 = arith.constant 0 : index
      %c0_25 = arith.constant 0 : index
      %56 = vector.load %arg4[%c0_23, %c0_24, %c0_25] : memref<1x1x1xf32, #tpu.memory_space<vmem>>, vector<1x1x1xf32>
      %57 = arith.addf %56, %55 : vector<1x1x1xf32>
      %c0_26 = arith.constant 0 : index
      %c0_27 = arith.constant 0 : index
      %c0_28 = arith.constant 0 : index
      %58 = vector.load %arg4[%c0_26, %c0_27, %c0_28] : memref<1x1x1xf32, #tpu.memory_space<vmem>>, vector<1x1x1xf32>
      tpu.vector_store %arg4[%c0_26, %c0_27, %c0_28], %57 {strides = array<i32>} : memref<1x1x1xf32, #tpu.memory_space<vmem>>, vector<1x1x1xf32>,
    } else {
    }
    %c0_6 = arith.constant 0 : index
    %c0_7 = arith.constant 0 : index
    %c0_8 = arith.constant 0 : index
    %14 = vector.load %arg4[%c0_6, %c0_7, %c0_8] : memref<1x1x1xf32, #tpu.memory_space<vmem>>, vector<1x1x1xf32>
    %cst = arith.constant 9.765625E-4 : f32
    %15 = vector.broadcast %cst : f32 to vector<1x1x1xf32>
    %16 = arith.mulf %14, %15 : vector<1x1x1xf32>
    %17 = tpu.iota {dimensions = array<i32: 1>} : vector<1x4x1xi32>
    %cst_9 = arith.constant 0.000000e+00 : f32
    %18 = vector.broadcast %cst_9 : f32 to vector<1x4x1xf32>
    %c0_i32_10 = arith.constant 0 : i32
    %19 = vector.broadcast %c0_i32_10 : i32 to vector<1x4x1xi32>
    %20 = arith.cmpi sge, %17, %19 : vector<1x4x1xi32>
    %c4_i32 = arith.constant 4 : i32
    %21 = vector.broadcast %c4_i32 : i32 to vector<1x4x1xi32>
    %22 = arith.cmpi slt, %17, %21 : vector<1x4x1xi32>
    %23 = arith.andi %20, %22 : vector<1x4x1xi1>
    %24 = vector.shape_cast %16 : vector<1x1x1xf32> to vector<1x1x1xf32>
    %25 = vector.broadcast %24 : vector<1x1x1xf32> to vector<1x4x1xf32>
    %26 = arith.select %23, %25, %18 : vector<1x4x1xi1>, vector<1x4x1xf32>
    %27 = vector.shape_cast %8 : vector<1x1x1280xi1> to vector<1x1x1280xi1>
    %28 = vector.broadcast %27 : vector<1x1x1280xi1> to vector<1x4x1280xi1>
    %29 = vector.shape_cast %26 : vector<1x4x1xf32> to vector<1x4x1xf32>
    %30 = vector.broadcast %29 : vector<1x4x1xf32> to vector<1x4x1280xf32>
    %31 = arith.select %28, %9, %30 : vector<1x4x1280xi1>, vector<1x4x1280xf32>
    %c0_11 = arith.constant 0 : index
    %c0_12 = arith.constant 0 : index
    %c0_13 = arith.constant 0 : index
    %32 = vector.load %arg3[%c0_11, %c0_12, %c0_13] : memref<1x4x1280xf32, #tpu.memory_space<vmem>>, vector<1x4x1280xf32>
    tpu.vector_store %arg3[%c0_11, %c0_12, %c0_13], %31 {strides = array<i32>} : memref<1x4x1280xf32, #tpu.memory_space<vmem>>, vector<1x4x1280xf32>,
    return
  }
  func.func @transform_0(%arg0: i32, %arg1: i32) -> (i32, i32, i32) {
    %c0_i32 = arith.constant 0 : i32
    %0 = arith.minsi %arg1, %c0_i32 : i32
    %c0_i32_0 = arith.constant 0 : i32
    %c0_i32_1 = arith.constant 0 : i32
    return %arg0, %c0_i32_0, %0 : i32, i32, i32
  }
  func.func @transform_1(%arg0: i32, %arg1: i32) -> (i32, i32, i32) {
    %c0_i32 = arith.constant 0 : i32
    %c0_i32_0 = arith.constant 0 : i32
    return %arg0, %c0_i32, %arg1 : i32, i32, i32
  }
}

</mosaic_0001>

<llo_original>
// kernel: tpu_custom_call.1
$region0: #{tpu_custom_call.1}
  #allocation0 [shape = 'u32[]', space=smem, size = 0x4, offset = 0x4, fixed_abs, tag = 'smem constant byte address 0x4 - core index']
  #allocation1 [shape = 'u32[144,128]{1,0:T(1,128)}', space=vmem, size = 0x12000, scoped, tag = 'internal scratch']
  #allocation2 [shape = 'f32[1,1,1]{2,1,0:T(1,128)}', space=vmem, size = 0x200, scoped, tag = 'scratch operand']
  %s0 = inlined_call_operand.hbm [shape: f32[1,4,1024], index: 0, kind: input, shape index: {}]
  %s1 = inlined_call_operand.hbm [shape: f32[1,4,1280], index: 1, kind: output, shape index: {}]
  %s2 = sld [smem:[#allocation0]]
  $region26: #{tpu_custom_call.1} parent=0
    _
  %s4 = ssub.s32 1, %s2
  %s5 = scalar_select 0, %s4, %s2
  $region1: #{tpu_custom_call.1} parent=0
    #allocation3 [shape = 'u8[20480]{0}', space=vmem, size = 0x5000, scoped, tag = 'input window, operand 0, single buffered']
    #allocation4 [shape = 's32[1]{0}', space=sflag, size = 0x4, scoped, tag = 'scoped memory for tpu_custom_call.1']
    #allocation5 [shape = 's32[1]{0}', space=sflag, size = 0x4, scoped, tag = 'scoped memory for tpu_custom_call.1']
    #allocation6 [shape = 'u8[20480]{0}', space=vmem, size = 0x5000, scoped, tag = 'output window, operand 0, single buffered']
    %6 = vsyncpa [#allocation4], 0
    %7 = vsyncpa [#allocation5], 0
    // Predicated region
    $region2: #{tpu_custom_call.1} parent=1 // pred_check
      _
    $region3: #{tpu_custom_call.1} parent=1 // pred_check_branch
      %9 = sbr.rel (0) target = $region5
    $region4: #{tpu_custom_call.1} parent=1 // pred_region
      %s11 = ssub.s32 640, 512
      %12 = vsyncadd [#allocation4], %s11
      %s14 = sshll.u32 [#allocation3], 4
      %s15 = int_to_ptr.vmem [resolvable:$true] %s14
      %17 = dma.hbm_to_vmem [thread:$0]  %s0, 512, %s15, [#allocation4]
    $region5: #{tpu_custom_call.1} parent=1 // pred_fallthru
      _
    // Predicated region
    $region6: #{tpu_custom_call.1} parent=1 // pred_check
      _
    $region7: #{tpu_custom_call.1} parent=1 // pred_check_branch
      %19 = sbr.rel (0) target = $region9
    $region8: #{tpu_custom_call.1} parent=1 // pred_region
      %20 = dma.done [#allocation4], 640
    $region9: #{tpu_custom_call.1} parent=1 // pred_fallthru
      _
    %p21 = scmp.eq.s32.totalorder 0, 0
    // Predicated region
    $region10: #{tpu_custom_call.1} parent=1 // pred_check
      %p22 = pneg %p21
    $region11: #{tpu_custom_call.1} parent=1 // pred_check_branch
      %24 = sbr.rel (%p22) target = $region13
    $region12: #{tpu_custom_call.1} parent=1 // pred_region
      %vm25 = vcmask 0
      %26 = vst.msk [vmem:[#allocation2] sm:$0x1] %vm25, 0.0
    $region13: #{tpu_custom_call.1} parent=1 // pred_fallthru
      _
    %s27 = smul.u32 0, 1280
    %v28 = vlaneseq
    %v29 = vand.u32 %v28, 127
    %v30 = vadd.s32 %v29, 128
    %v31 = vadd.s32 %v29, 256
    %v32 = vadd.s32 %v29, 384
    %v33 = vadd.s32 %v29, 512
    %v34 = vadd.s32 %v29, 640
    %v35 = vadd.s32 %v29, 768
    %v36 = vadd.s32 %v29, 896
    %v37 = vadd.s32 %v29, 1024
    %v38 = vadd.s32 %v29, 1152
    %v39 = vstv %s27
    %v40 = vadd.s32 %v39, %v29
    %v41 = vadd.s32 %v39, %v30
    %v42 = vadd.s32 %v39, %v31
    %v43 = vadd.s32 %v39, %v32
    %v44 = vadd.s32 %v39, %v33
    %v45 = vadd.s32 %v39, %v34
    %v46 = vadd.s32 %v39, %v35
    %v47 = vadd.s32 %v39, %v36
    %v48 = vadd.s32 %v39, %v37
    %v49 = vadd.s32 %v39, %v38
    %vm50 = vcmp.lt.s32.totalorder %v40, 1024
    %vm51 = vcmp.lt.s32.totalorder %v41, 1024
    %vm52 = vcmp.lt.s32.totalorder %v42, 1024
    %vm53 = vcmp.lt.s32.totalorder %v43, 1024
    %vm54 = vcmp.lt.s32.totalorder %v44, 1024
    %vm55 = vcmp.lt.s32.totalorder %v45, 1024
    %vm56 = vcmp.lt.s32.totalorder %v46, 1024
    %vm57 = vcmp.lt.s32.totalorder %v47, 1024
    %vm58 = vcmp.lt.s32.totalorder %v48, 1024
    %vm59 = vcmp.lt.s32.totalorder %v49, 1024
    %v60 = vld [vmem:[#allocation3] sm:$0xff]
    %v61 = vld [vmem:[#allocation3 + $0x8] sm:$0xff]
    %v62 = vld [vmem:[#allocation3 + $0x10] sm:$0xff]
    %v63 = vld [vmem:[#allocation3 + $0x18] sm:$0xff]
    %v64 = vld [vmem:[#allocation3 + $0x20] sm:$0xff]
    %p65 = scmp.lt.s32.totalorder %s27, 1024
    // Predicated region
    $region14: #{tpu_custom_call.1} parent=1 // pred_check
      %p66 = pneg %p65
    $region15: #{tpu_custom_call.1} parent=1 // pred_check_branch
      %68 = sbr.rel (%p66) target = $region17
    $region16: #{tpu_custom_call.1} parent=1 // pred_region
      %v69 = vlaneseq
      %v70 = vshrl.u32 %v69, 7
      %v76 = vcombine.high %v60, %v60
      %v77 = vcombine.high %v61, %v61
      %v78 = vcombine.high %v62, %v62
      %v79 = vcombine.high %v63, %v63
      %v80 = vcombine.high %v64, %v64
      %vm86 = vcmask 1043456
      %v87 = vsel %vm86, %v60, 0.0
      %v88 = vrot.slane %v87, 4
      %v89 = vadd.f32 %v87, %v88
      %v90 = vrot.slane %v89, 2
      %v91 = vadd.f32 %v89, %v90
      %v92 = vrot.slane %v91, 1
      %v93 = vadd.f32 %v91, %v92
      %v94 = vsel %vm86, %v76, 0.0
      %v95 = vrot.slane %v94, 4
      %v96 = vadd.f32 %v94, %v95
      %v97 = vrot.slane %v96, 2
      %v98 = vadd.f32 %v96, %v97
      %v99 = vrot.slane %v98, 1
      %v100 = vadd.f32 %v98, %v99
      %v101 = vsel %vm86, %v61, 0.0
      %v102 = vrot.slane %v101, 4
      %v103 = vadd.f32 %v101, %v102
      %v104 = vrot.slane %v103, 2
      %v105 = vadd.f32 %v103, %v104
      %v106 = vrot.slane %v105, 1
      %v107 = vadd.f32 %v105, %v106
      %v108 = vsel %vm86, %v77, 0.0
      %v109 = vrot.slane %v108, 4
      %v110 = vadd.f32 %v108, %v109
      %v111 = vrot.slane %v110, 2
      %v112 = vadd.f32 %v110, %v111
      %v113 = vrot.slane %v112, 1
      %v114 = vadd.f32 %v112, %v113
      %v115 = vsel %vm86, %v62, 0.0
      %v116 = vrot.slane %v115, 4
      %v117 = vadd.f32 %v115, %v116
      %v118 = vrot.slane %v117, 2
      %v119 = vadd.f32 %v117, %v118
      %v120 = vrot.slane %v119, 1
      %v121 = vadd.f32 %v119, %v120
      %v122 = vsel %vm86, %v78, 0.0
      %v123 = vrot.slane %v122, 4
      %v124 = vadd.f32 %v122, %v123
      %v125 = vrot.slane %v124, 2
      %v126 = vadd.f32 %v124, %v125
      %v127 = vrot.slane %v126, 1
      %v128 = vadd.f32 %v126, %v127
      %v129 = vsel %vm86, %v63, 0.0
      %v130 = vrot.slane %v129, 4
      %v131 = vadd.f32 %v129, %v130
      %v132 = vrot.slane %v131, 2
      %v133 = vadd.f32 %v131, %v132
      %v134 = vrot.slane %v133, 1
      %v135 = vadd.f32 %v133, %v134
      %v136 = vsel %vm86, %v79, 0.0
      %v137 = vrot.slane %v136, 4
      %v138 = vadd.f32 %v136, %v137
      %v139 = vrot.slane %v138, 2
      %v140 = vadd.f32 %v138, %v139
      %v141 = vrot.slane %v140, 1
      %v142 = vadd.f32 %v140, %v141
      %v143 = vsel %vm86, %v64, 0.0
      %v144 = vrot.slane %v143, 4
      %v145 = vadd.f32 %v143, %v144
      %v146 = vrot.slane %v145, 2
      %v147 = vadd.f32 %v145, %v146
      %v148 = vrot.slane %v147, 1
      %v149 = vadd.f32 %v147, %v148
      %v150 = vsel %vm86, %v80, 0.0
      %v151 = vrot.slane %v150, 4
      %v152 = vadd.f32 %v150, %v151
      %v153 = vrot.slane %v152, 2
      %v154 = vadd.f32 %v152, %v153
      %v155 = vrot.slane %v154, 1
      %v156 = vadd.f32 %v154, %v155
      %v157 = vrcp.pop 4.0
      %v158 = vmul.f32 %v93, %v157
      %v159 = vmul.f32 %v100, %v157
      %v160 = vmul.f32 %v107, %v157
      %v161 = vmul.f32 %v114, %v157
      %v162 = vmul.f32 %v121, %v157
      %v163 = vmul.f32 %v128, %v157
      %v164 = vmul.f32 %v135, %v157
      %v165 = vmul.f32 %v142, %v157
      %v166 = vmul.f32 %v149, %v157
      %v167 = vmul.f32 %v156, %v157
      %v178 = vcombine.low %v158, %v159
      %v179 = vcombine.low %v160, %v161
      %v180 = vcombine.low %v162, %v163
      %v181 = vcombine.low %v164, %v165
      %v182 = vcombine.low %v166, %v167
      %v188 = vsub.f32 %v60, %v178
      %v189 = vsub.f32 %v61, %v179
      %v190 = vsub.f32 %v62, %v180
      %v191 = vsub.f32 %v63, %v181
      %v192 = vsub.f32 %v64, %v182
      %v193 = vmul.f32 %v188, %v188
      %v194 = vmul.f32 %v189, %v189
      %v195 = vmul.f32 %v190, %v190
      %v196 = vmul.f32 %v191, %v191
      %v197 = vmul.f32 %v192, %v192
      %v203 = vcombine.high %v193, %v193
      %v204 = vcombine.high %v194, %v194
      %v205 = vcombine.high %v195, %v195
      %v206 = vcombine.high %v196, %v196
      %v207 = vcombine.high %v197, %v197
      %v213 = vsel %vm86, %v193, 0.0
      %v214 = vrot.slane %v213, 4
      %v215 = vadd.f32 %v213, %v214
      %v216 = vrot.slane %v215, 2
      %v217 = vadd.f32 %v215, %v216
      %v218 = vrot.slane %v217, 1
      %v219 = vadd.f32 %v217, %v218
      %v220 = vsel %vm86, %v203, 0.0
      %v221 = vrot.slane %v220, 4
      %v222 = vadd.f32 %v220, %v221
      %v223 = vrot.slane %v222, 2
      %v224 = vadd.f32 %v222, %v223
      %v225 = vrot.slane %v224, 1
      %v226 = vadd.f32 %v224, %v225
      %v227 = vsel %vm86, %v194, 0.0
      %v228 = vrot.slane %v227, 4
      %v229 = vadd.f32 %v227, %v228
      %v230 = vrot.slane %v229, 2
      %v231 = vadd.f32 %v229, %v230
      %v232 = vrot.slane %v231, 1
      %v233 = vadd.f32 %v231, %v232
      %v234 = vsel %vm86, %v204, 0.0
      %v235 = vrot.slane %v234, 4
      %v236 = vadd.f32 %v234, %v235
      %v237 = vrot.slane %v236, 2
      %v238 = vadd.f32 %v236, %v237
      %v239 = vrot.slane %v238, 1
      %v240 = vadd.f32 %v238, %v239
      %v241 = vsel %vm86, %v195, 0.0
      %v242 = vrot.slane %v241, 4
      %v243 = vadd.f32 %v241, %v242
      %v244 = vrot.slane %v243, 2
      %v245 = vadd.f32 %v243, %v244
      %v246 = vrot.slane %v245, 1
      %v247 = vadd.f32 %v245, %v246
      %v248 = vsel %vm86, %v205, 0.0
      %v249 = vrot.slane %v248, 4
      %v250 = vadd.f32 %v248, %v249
      %v251 = vrot.slane %v250, 2
      %v252 = vadd.f32 %v250, %v251
      %v253 = vrot.slane %v252, 1
      %v254 = vadd.f32 %v252, %v253
      %v255 = vsel %vm86, %v196, 0.0
      %v256 = vrot.slane %v255, 4
      %v257 = vadd.f32 %v255, %v256
      %v258 = vrot.slane %v257, 2
      %v259 = vadd.f32 %v257, %v258
      %v260 = vrot.slane %v259, 1
      %v261 = vadd.f32 %v259, %v260
      %v262 = vsel %vm86, %v206, 0.0
      %v263 = vrot.slane %v262, 4
      %v264 = vadd.f32 %v262, %v263
      %v265 = vrot.slane %v264, 2
      %v266 = vadd.f32 %v264, %v265
      %v267 = vrot.slane %v266, 1
      %v268 = vadd.f32 %v266, %v267
      %v269 = vsel %vm86, %v197, 0.0
      %v270 = vrot.slane %v269, 4
      %v271 = vadd.f32 %v269, %v270
      %v272 = vrot.slane %v271, 2
      %v273 = vadd.f32 %v271, %v272
      %v274 = vrot.slane %v273, 1
      %v275 = vadd.f32 %v273, %v274
      %v276 = vsel %vm86, %v207, 0.0
      %v277 = vrot.slane %v276, 4
      %v278 = vadd.f32 %v276, %v277
      %v279 = vrot.slane %v278, 2
      %v280 = vadd.f32 %v278, %v279
      %v281 = vrot.slane %v280, 1
      %v282 = vadd.f32 %v280, %v281
      %v283 = vmul.f32 %v219, 0.33333334
      %v284 = vmul.f32 %v226, 0.33333334
      %v285 = vmul.f32 %v233, 0.33333334
      %v286 = vmul.f32 %v240, 0.33333334
      %v287 = vmul.f32 %v247, 0.33333334
      %v288 = vmul.f32 %v254, 0.33333334
      %v289 = vmul.f32 %v261, 0.33333334
      %v290 = vmul.f32 %v268, 0.33333334
      %v291 = vmul.f32 %v275, 0.33333334
      %v292 = vmul.f32 %v282, 0.33333334
      %v293 = vadd.f32 %v283, 1e-08
      %v294 = vadd.f32 %v284, 1e-08
      %v295 = vadd.f32 %v285, 1e-08
      %v296 = vadd.f32 %v286, 1e-08
      %v297 = vadd.f32 %v287, 1e-08
      %v298 = vadd.f32 %v288, 1e-08
      %v299 = vadd.f32 %v289, 1e-08
      %v300 = vadd.f32 %v290, 1e-08
      %v301 = vadd.f32 %v291, 1e-08
      %v302 = vadd.f32 %v292, 1e-08
      %v303 = vrsqrt.pop %v293
      %v304 = vmul.f32 %v293, %v303
      %vm305 = vcmp.eq.f32.partialorder %v293, inf
      %v306 = vsel %vm305, %v293, %v304
      %vm307 = vcmp.eq.f32.partialorder %v293, 0.0
      %v308 = vand.u32 %v293, 2147483648
      %v309 = vsel %vm307, %v308, %v306
      %v310 = vrsqrt.pop %v294
      %v311 = vmul.f32 %v294, %v310
      %vm312 = vcmp.eq.f32.partialorder %v294, inf
      %v313 = vsel %vm312, %v294, %v311
      %vm314 = vcmp.eq.f32.partialorder %v294, 0.0
      %v315 = vand.u32 %v294, 2147483648
      %v316 = vsel %vm314, %v315, %v313
      %v317 = vrsqrt.pop %v295
      %v318 = vmul.f32 %v295, %v317
      %vm319 = vcmp.eq.f32.partialorder %v295, inf
      %v320 = vsel %vm319, %v295, %v318
      %vm321 = vcmp.eq.f32.partialorder %v295, 0.0
      %v322 = vand.u32 %v295, 2147483648
      %v323 = vsel %vm321, %v322, %v320
      %v324 = vrsqrt.pop %v296
      %v325 = vmul.f32 %v296, %v324
      %vm326 = vcmp.eq.f32.partialorder %v296, inf
      %v327 = vsel %vm326, %v296, %v325
      %vm328 = vcmp.eq.f32.partialorder %v296, 0.0
      %v329 = vand.u32 %v296, 2147483648
      %v330 = vsel %vm328, %v329, %v327
      %v331 = vrsqrt.pop %v297
      %v332 = vmul.f32 %v297, %v331
      %vm333 = vcmp.eq.f32.partialorder %v297, inf
      %v334 = vsel %vm333, %v297, %v332
      %vm335 = vcmp.eq.f32.partialorder %v297, 0.0
      %v336 = vand.u32 %v297, 2147483648
      %v337 = vsel %vm335, %v336, %v334
      %v338 = vrsqrt.pop %v298
      %v339 = vmul.f32 %v298, %v338
      %vm340 = vcmp.eq.f32.partialorder %v298, inf
      %v341 = vsel %vm340, %v298, %v339
      %vm342 = vcmp.eq.f32.partialorder %v298, 0.0
      %v343 = vand.u32 %v298, 2147483648
      %v344 = vsel %vm342, %v343, %v341
      %v345 = vrsqrt.pop %v299
      %v346 = vmul.f32 %v299, %v345
      %vm347 = vcmp.eq.f32.partialorder %v299, inf
      %v348 = vsel %vm347, %v299, %v346
      %vm349 = vcmp.eq.f32.partialorder %v299, 0.0
      %v350 = vand.u32 %v299, 2147483648
      %v351 = vsel %vm349, %v350, %v348
      %v352 = vrsqrt.pop %v300
      %v353 = vmul.f32 %v300, %v352
      %vm354 = vcmp.eq.f32.partialorder %v300, inf
      %v355 = vsel %vm354, %v300, %v353
      %vm356 = vcmp.eq.f32.partialorder %v300, 0.0
      %v357 = vand.u32 %v300, 2147483648
      %v358 = vsel %vm356, %v357, %v355
      %v359 = vrsqrt.pop %v301
      %v360 = vmul.f32 %v301, %v359
      %vm361 = vcmp.eq.f32.partialorder %v301, inf
      %v362 = vsel %vm361, %v301, %v360
      %vm363 = vcmp.eq.f32.partialorder %v301, 0.0
      %v364 = vand.u32 %v301, 2147483648
      %v365 = vsel %vm363, %v364, %v362
      %v366 = vrsqrt.pop %v302
      %v367 = vmul.f32 %v302, %v366
      %vm368 = vcmp.eq.f32.partialorder %v302, inf
      %v369 = vsel %vm368, %v302, %v367
      %vm370 = vcmp.eq.f32.partialorder %v302, 0.0
      %v371 = vand.u32 %v302, 2147483648
      %v372 = vsel %vm370, %v371, %v369
      %v373 = vsel %vm50, %v309, 0.0
      %v374 = vsel %vm51, %v316, 0.0
      %v375 = vsel %vm52, %v323, 0.0
      %v376 = vsel %vm53, %v330, 0.0
      %v377 = vsel %vm54, %v337, 0.0
      %v378 = vsel %vm55, %v344, 0.0
      %v379 = vsel %vm56, %v351, 0.0
      %v380 = vsel %vm57, %v358, 0.0
      %v381 = vsel %vm58, %v365, 0.0
      %v382 = vsel %vm59, %v372, 0.0
      %v383 = vadd.f32 %v373, %v374
      %v384 = vadd.f32 %v383, %v375
      %v385 = vadd.f32 %v384, %v376
      %v386 = vadd.f32 %v385, %v377
      %v387 = vadd.f32 %v386, %v378
      %v388 = vadd.f32 %v387, %v379
      %v389 = vadd.f32 %v388, %v380
      %v390 = vadd.f32 %v389, %v381
      %v391 = vadd.f32 %v390, %v382
      %392 = vadd.xlane.f32.xlu0 %v391
      %v393 = vpop.xlane.xlu0 %392
      %vm394 = vcmp.eq.s32.totalorder %v70, 0
      %v395 = vsel %vm394, %v393, 0.0
      %v396 = vld [vmem:[#allocation2] sm:$0x1]
      %v397 = vadd.f32 %v396, %v395
      %vm398 = vcmask 0
      %399 = vst.msk [vmem:[#allocation2] sm:$0x1] %vm398, %v397
    $region17: #{tpu_custom_call.1} parent=1 // pred_fallthru
      _
    %v400 = vld [vmem:[#allocation2] sm:$0x1]
    %v401 = vmul.f32 %v400, 0.0009765625
    %v402 = vlaneseq
    %v403 = vshrl.u32 %v402, 7
    %vm404 = vcmp.ge.s32.totalorder %v403, 0
    %vm405 = vcmp.lt.s32.totalorder %v403, 4
    %vm406 = vmand %vm404, %vm405
    %v408 = vlaneseq
    %v409 = vshrl.u32 %v408, 7
    %v410 = vsub.s32 0, %v409
    %v411 = vrot.slane %v401, %v410
    %v413 = vsel %vm406, %v411, 0.0
    %v414 = vsel %vm50, 1, 0
    %v415 = vsel %vm51, 1, 0
    %v416 = vsel %vm52, 1, 0
    %v417 = vsel %vm53, 1, 0
    %v418 = vsel %vm54, 1, 0
    %v419 = vsel %vm55, 1, 0
    %v420 = vsel %vm56, 1, 0
    %v421 = vsel %vm57, 1, 0
    %v422 = vsel %vm58, 1, 0
    %v423 = vsel %vm59, 1, 0
    %vm424 = vcmp.eq.s32.totalorder %v414, 1
    %vm425 = vcmp.eq.s32.totalorder %v415, 1
    %vm426 = vcmp.eq.s32.totalorder %v416, 1
    %vm427 = vcmp.eq.s32.totalorder %v417, 1
    %vm428 = vcmp.eq.s32.totalorder %v418, 1
    %vm429 = vcmp.eq.s32.totalorder %v419, 1
    %vm430 = vcmp.eq.s32.totalorder %v420, 1
    %vm431 = vcmp.eq.s32.totalorder %v421, 1
    %vm432 = vcmp.eq.s32.totalorder %v422, 1
    %vm433 = vcmp.eq.s32.totalorder %v423, 1
    %435 = vset.pattern.permute.xlu0 0
    %436 = vperm.xlu0 %435, %v413
    %v437 = vpop.permute.xlu0 %436
    %v444 = vcombine.high %v60, %v60
    %v445 = vcombine.high %v61, %v61
    %v446 = vcombine.high %v62, %v62
    %v447 = vcombine.high %v63, %v63
    %v448 = vcombine.high %v64, %v64
    %v454 = vsel %vm424, %v60, %v437
    %v455 = vsel %vm425, %v444, %v437
    %v456 = vsel %vm426, %v61, %v437
    %v457 = vsel %vm427, %v445, %v437
    %v458 = vsel %vm428, %v62, %v437
    %v459 = vsel %vm429, %v446, %v437
    %v460 = vsel %vm430, %v63, %v437
    %v461 = vsel %vm431, %v447, %v437
    %v462 = vsel %vm432, %v64, %v437
    %v463 = vsel %vm433, %v448, %v437
    %v474 = vcombine.low %v454, %v455
    %v475 = vcombine.low %v456, %v457
    %v476 = vcombine.low %v458, %v459
    %v477 = vcombine.low %v460, %v461
    %v478 = vcombine.low %v462, %v463
    %484 = vst [vmem:[#allocation6] sm:$0xff] %v474
    %485 = vst [vmem:[#allocation6 + $0x8] sm:$0xff] %v475
    %486 = vst [vmem:[#allocation6 + $0x10] sm:$0xff] %v476
    %487 = vst [vmem:[#allocation6 + $0x18] sm:$0xff] %v477
    %488 = vst [vmem:[#allocation6 + $0x20] sm:$0xff] %v478
    // Predicated region
    $region18: #{tpu_custom_call.1} parent=1 // pred_check
      _
    $region19: #{tpu_custom_call.1} parent=1 // pred_check_branch
      %490 = sbr.rel (0) target = $region21
    $region20: #{tpu_custom_call.1} parent=1 // pred_region
      %s492 = ssub.s32 640, 640
      %493 = vsyncadd [#allocation5], %s492
      %s495 = sshll.u32 [#allocation6], 4
      %s496 = int_to_ptr.vmem [resolvable:$true] %s495
      %498 = dma.vmem_to_hbm [thread:$0]  %s496, 640, %s1, [#allocation5]
    $region21: #{tpu_custom_call.1} parent=1 // pred_fallthru
      _
    // Predicated region
    $region22: #{tpu_custom_call.1} parent=1 // pred_check
      _
    $region23: #{tpu_custom_call.1} parent=1 // pred_check_branch
      %500 = sbr.rel (0) target = $region25
    $region24: #{tpu_custom_call.1} parent=1 // pred_region
      %501 = dma.done [#allocation5], 640
    $region25: #{tpu_custom_call.1} parent=1 // pred_fallthru
      _
    %502 = vsyncpa [#allocation4], 1
    %503 = vsyncpa [#allocation5], 1

</llo_original>
